<compile_context>
chip_gen: v6e
topology: v6e:2x2x1
jax: 0.10.0
libtpu: 0.0.40
codegen_flags: <defaults>
</compile_context>

<pallas_src>
import functools

import numpy as np
import jax
import jax.numpy as jnp
from jax import lax
from jax.experimental import pallas as pl
from jax.experimental.pallas import tpu as pltpu


def _ft_kernel(W, x_ref, feat_ref, w1_ref, w2_ref, b_ref, mask_ref, o_ref):
    C, BN = x_ref.shape                      # (C, B*H*W); lane dim = B*H*W
    C2 = 2 * C                               # scale + shift branches fused

    # flat-index offset of each 3x3 tap (row-major over H*W)
    offs = [(dy - 1) * W + (dx - 1) for dy in range(3) for dx in range(3)]

    # Hoist the 9 mask rows once; reused by both conv_tap_sum calls
    # (9 sublane extracts instead of 18).
    mask_rows = [mask_ref[t:t + 1, :] for t in range(9)]

    def conv_tap_sum(g, bias_col):
        # g: (9*C2, BN) per-tap partial products; combine via lane rolls + masks.
        acc = None
        for t, off in enumerate(offs):
            gt = g[t * C2:(t + 1) * C2, :]                      # aligned slice
            if off != 0:
                gt = pltpu.roll(gt, shift=(-off) % BN, axis=1)  # shift-after-matmul
            term = gt * mask_rows[t]                            # zero invalid halo taps
            acc = term if acc is None else acc + term
        return acc + bias_col                                   # (C2,1) bias broadcast

    feat = feat_ref[...]                                        # (C, BN)
    g1 = lax.dot_general(w1_ref[...], feat,                     # (9*C2, BN)
                         (((1,), (0,)), ((), ())),
                         preferred_element_type=jnp.float32)
    h1 = conv_tap_sum(g1, b_ref[:, 0:1])                        # conv1, both branches
    h1 = jnp.maximum(h1, 0.2 * h1)                              # LeakyReLU(0.2)

    # TODO(synk): if C grows (>=32-64), split conv2 into two K=C dots (scale /
    # shift halves of h1) instead of this block-diagonal K=2C dot.
    g2 = lax.dot_general(w2_ref[...], h1,                       # (9*C2, BN)
                         (((1,), (0,)), ((), ())),
                         preferred_element_type=jnp.float32)
    ss = conv_tap_sum(g2, b_ref[:, 1:2])                        # conv2, both branches

    x = x_ref[...]
    scale = ss[0:C, :]
    shift = ss[C:C2, :]
    o_ref[...] = x * scale + x + shift                          # x*(scale+1)+shift


def prepare_ft_params(params, B, H, W):
    """Hoisted, one-time preprocessing of conv weights / biases / halo masks.

    params = (ws1, bs1, ws2, bs2, wh1, bh1, wh2, bh2); conv weights in HWIO
    layout (3, 3, Cin, Cout) (i.e. torch_weight.permute(2, 3, 1, 0)), biases (C,).
    Returns (w1s, w2s, biases, masks) ready to feed to feature_ft_layer.
    """
    ws1, bs1, ws2, bs2, wh1, bh1, wh2, bh2 = params
    C = ws1.shape[2]
    C2 = 2 * C
    N = H * W

    # Fuse the two branches: stacked weights, rows = tap*2C + out_channel.
    w1hat = jnp.concatenate([ws1, wh1], axis=3)                       # (3,3,C,2C)
    w1s = jnp.transpose(w1hat, (0, 1, 3, 2)).reshape(9 * C2, C)       # (18C, C)

    w2hat = jnp.zeros((3, 3, C2, C2), ws2.dtype)                      # block-diagonal
    w2hat = w2hat.at[:, :, :C, :C].set(ws2)
    w2hat = w2hat.at[:, :, C:, C:].set(wh2)
    w2s = jnp.transpose(w2hat, (0, 1, 3, 2)).reshape(9 * C2, C2)      # (18C, 2C)

    biases = jnp.stack([jnp.concatenate([bs1, bh1]),
                        jnp.concatenate([bs2, bh2])], axis=1)         # (2C, 2)

    # Per-tap validity masks (replace SAME zero-padding), tiled across batch so
    # rolls that cross an image/batch boundary are zeroed.
    yy, xx = np.meshgrid(np.arange(H), np.arange(W), indexing="ij")
    masks = np.stack([
        (((yy + dy - 1) >= 0) & ((yy + dy - 1) < H) &
         ((xx + dx - 1) >= 0) & ((xx + dx - 1) < W)).reshape(-1)
        for dy in range(3) for dx in range(3)
    ]).astype(np.float32)                                             # (9, N)
    masks = np.tile(masks, (1, B))                                    # (9, B*N)

    return w1s, w2s, biases, jnp.asarray(masks)


def feature_ft_layer(x, feat, prep):
    """x, feat: (B, C, H, W) float32 (NCHW).  prep = prepare_ft_params(...)."""
    B, C, H, W = x.shape
    N = H * W
    BN = B * N
    C2 = 2 * C
    w1s, w2s, biases, masks = prep

    # Fold batch into the lane axis: (B,C,N) -> (C,B,N) -> (C, B*N).
    # The leading-dim transpose is a tiny (B*C*N*4 B) copy; the trailing
    # reshapes are free.  One lane-dense slab => a single grid step.
    x_f = jnp.transpose(x.reshape(B, C, N), (1, 0, 2)).reshape(C, BN)
    feat_f = jnp.transpose(feat.reshape(B, C, N), (1, 0, 2)).reshape(C, BN)

    # TODO(synk): for large B*H*W (> ~1024 lanes), add a lane-tile grid axis
    # (halo folded into per-tile masks) sized against v7x's 64 MiB VMEM; the
    # (18C, tileN) f32 matmul intermediate is the dominant consumer.
    grid_spec = pltpu.PrefetchScalarGridSpec(
        num_scalar_prefetch=0,
        grid=(1,),
        in_specs=[
            pl.BlockSpec((C, BN), lambda i: (0, 0)),        # x
            pl.BlockSpec((C, BN), lambda i: (0, 0)),        # feat
            pl.BlockSpec((9 * C2, C), lambda i: (0, 0)),    # w1 stacked
            pl.BlockSpec((9 * C2, C2), lambda i: (0, 0)),   # w2 stacked (block-diag)
            pl.BlockSpec((C2, 2), lambda i: (0, 0)),        # biases
            pl.BlockSpec((9, BN), lambda i: (0, 0)),        # halo masks
        ],
        out_specs=pl.BlockSpec((C, BN), lambda i: (0, 0)),
    )

    cost = pl.CostEstimate(
        flops=int(2 * 9 * C2 * (C + C2) * BN),
        transcendentals=0,
        bytes_accessed=int(4 * (3 * C * BN
                                + w1s.size + w2s.size + biases.size + masks.size)),
    )

    out = pl.pallas_call(
        functools.partial(_ft_kernel, W),
        out_shape=jax.ShapeDtypeStruct((C, BN), x.dtype),
        grid_spec=grid_spec,
        cost_estimate=cost,
    )(x_f, feat_f, w1s, w2s, biases, masks)

    return jnp.transpose(out.reshape(C, B, N), (1, 0, 2)).reshape(B, C, H, W)


# ------------------------- pure-JAX reference -------------------------------

def _conv_ref(inp, w, b):
    out = lax.conv_general_dilated(
        inp, w, window_strides=(1, 1), padding="SAME",
        dimension_numbers=("NCHW", "HWIO", "NCHW"),
        precision=lax.Precision.HIGHEST)
    return out + b[None, :, None, None]


def _leaky(v):
    return jnp.where(v >= 0, v, 0.2 * v)


def feature_ft_layer_ref(x, feat, params):
    ws1, bs1, ws2, bs2, wh1, bh1, wh2, bh2 = params
    scale = _conv_ref(_leaky(_conv_ref(feat, ws1, bs1)), ws2, bs2)
    shift = _conv_ref(_leaky(_conv_ref(feat, wh1, bh1)), wh2, bh2)
    return x * (scale + 1.0) + shift


# ------------------------------- main ----------------------------------------

if __name__ == "__main__":
    B, C, H, W = 2, 4, 16, 16    # n_feats = 4, NCHW like the PyTorch module
    key = jax.random.PRNGKey(0)
    keys = jax.random.split(key, 10)

    x = jax.random.normal(keys[0], (B, C, H, W), jnp.float32)
    feat = jax.random.normal(keys[1], (B, C, H, W), jnp.float32)

    # Deterministic synthetic parameters (HWIO conv weights + per-out-channel bias)
    def wgen(k):
        return jax.random.normal(k, (3, 3, C, C), jnp.float32) * (1.0 / np.sqrt(9 * C))

    def bgen(k):
        return jax.random.normal(k, (C,), jnp.float32) * 0.1

    params = (
        wgen(keys[2]), bgen(keys[3]),   # scale conv1
        wgen(keys[4]), bgen(keys[5]),   # scale conv2
        wgen(keys[6]), bgen(keys[7]),   # shift conv1
        wgen(keys[8]), bgen(keys[9]),   # shift conv2
    )

    # One-time parameter/mask preprocessing (hoisted out of the per-call path).
    prep = prepare_ft_params(params, B, H, W)
    prep = jax.block_until_ready(prep)

    out = feature_ft_layer(x, feat, prep)
    out = jax.block_until_ready(out)

    ref = feature_ft_layer_ref(x, feat, params)
    np.testing.assert_allclose(np.asarray(out), np.asarray(ref), rtol=1e-4, atol=1e-4)

    print("KERNEL_OK")
</pallas_src>

<mosaic_0001>
module attributes {stable_mosaic.version = 11 : i64} {
  func.func @_ft_kernel(%arg0: i32, %arg1: memref<4x512xf32, #tpu.memory_space<vmem>>, %arg2: memref<4x512xf32, #tpu.memory_space<vmem>>, %arg3: memref<72x4xf32, #tpu.memory_space<vmem>>, %arg4: memref<72x8xf32, #tpu.memory_space<vmem>>, %arg5: memref<8x2xf32, #tpu.memory_space<vmem>>, %arg6: memref<9x512xf32, #tpu.memory_space<vmem>>, %arg7: memref<4x512xf32, #tpu.memory_space<vmem>>) attributes {dimension_semantics = [#tpu.dimension_semantics<arbitrary>], iteration_bounds = array<i64: 1>, scalar_prefetch = 0 : i64, scratch_operands = 0 : i64, tpu.core_type = #tpu.core_type<tc>, window_params = [{pipeline_mode = #tpu.pipeline_mode<synchronous>, transform_indices = @transform_0, window_bounds = array<i64: 4, 512>}, {pipeline_mode = #tpu.pipeline_mode<synchronous>, transform_indices = @transform_1, window_bounds = array<i64: 4, 512>}, {pipeline_mode = #tpu.pipeline_mode<synchronous>, transform_indices = @transform_2, window_bounds = array<i64: 72, 4>}, {pipeline_mode = #tpu.pipeline_mode<synchronous>, transform_indices = @transform_3, window_bounds = array<i64: 72, 8>}, {pipeline_mode = #tpu.pipeline_mode<synchronous>, transform_indices = @transform_4, window_bounds = array<i64: 8, 2>}, {pipeline_mode = #tpu.pipeline_mode<synchronous>, transform_indices = @transform_5, window_bounds = array<i64: 9, 512>}, {pipeline_mode = #tpu.pipeline_mode<synchronous>, transform_indices = @transform_6, window_bounds = array<i64: 4, 512>}]} {
    %c0 = arith.constant 0 : index
    %c0_0 = arith.constant 0 : index
    %0 = vector.load %arg6[%c0, %c0_0] : memref<9x512xf32, #tpu.memory_space<vmem>>, vector<1x512xf32>
    %c1 = arith.constant 1 : index
    %c0_1 = arith.constant 0 : index
    %1 = vector.load %arg6[%c1, %c0_1] : memref<9x512xf32, #tpu.memory_space<vmem>>, vector<1x512xf32>
    %c2 = arith.constant 2 : index
    %c0_2 = arith.constant 0 : index
    %2 = vector.load %arg6[%c2, %c0_2] : memref<9x512xf32, #tpu.memory_space<vmem>>, vector<1x512xf32>
    %c3 = arith.constant 3 : index
    %c0_3 = arith.constant 0 : index
    %3 = vector.load %arg6[%c3, %c0_3] : memref<9x512xf32, #tpu.memory_space<vmem>>, vector<1x512xf32>
    %c4 = arith.constant 4 : index
    %c0_4 = arith.constant 0 : index
    %4 = vector.load %arg6[%c4, %c0_4] : memref<9x512xf32, #tpu.memory_space<vmem>>, vector<1x512xf32>
    %c5 = arith.constant 5 : index
    %c0_5 = arith.constant 0 : index
    %5 = vector.load %arg6[%c5, %c0_5] : memref<9x512xf32, #tpu.memory_space<vmem>>, vector<1x512xf32>
    %c6 = arith.constant 6 : index
    %c0_6 = arith.constant 0 : index
    %6 = vector.load %arg6[%c6, %c0_6] : memref<9x512xf32, #tpu.memory_space<vmem>>, vector<1x512xf32>
    %c7 = arith.constant 7 : index
    %c0_7 = arith.constant 0 : index
    %7 = vector.load %arg6[%c7, %c0_7] : memref<9x512xf32, #tpu.memory_space<vmem>>, vector<1x512xf32>
    %c8 = arith.constant 8 : index
    %c0_8 = arith.constant 0 : index
    %8 = vector.load %arg6[%c8, %c0_8] : memref<9x512xf32, #tpu.memory_space<vmem>>, vector<1x512xf32>
    %c0_9 = arith.constant 0 : index
    %c0_10 = arith.constant 0 : index
    %9 = vector.load %arg2[%c0_9, %c0_10] : memref<4x512xf32, #tpu.memory_space<vmem>>, vector<4x512xf32>
    %c0_11 = arith.constant 0 : index
    %c0_12 = arith.constant 0 : index
    %10 = vector.load %arg3[%c0_11, %c0_12] : memref<72x4xf32, #tpu.memory_space<vmem>>, vector<72x4xf32>
    %cst = arith.constant dense<0.000000e+00> : vector<72x512xf32>
    %11 = tpu.matmul %10, %9, %cst {dimension_numbers = #tpu.dot_dimension_numbers<[1], [0], [0], [1], [0, 0, 1, 1], [], []>} : vector<72x4xf32>, vector<4x512xf32>, vector<72x512xf32> -> vector<72x512xf32>
    %c0_13 = arith.constant 0 : index
    %c0_14 = arith.constant 0 : index
    %12 = vector.load %arg5[%c0_13, %c0_14] : memref<8x2xf32, #tpu.memory_space<vmem>>, vector<8x1xf32>
    %13 = vector.extract_strided_slice %11 {offsets = [0, 0], sizes = [8, 512], strides = [1, 1]} : vector<72x512xf32> to vector<8x512xf32>
    %c17_i32 = arith.constant 17 : i32
    %14 = tpu.dynamic_rotate %13 by %c17_i32 dim 1 : vector<8x512xf32>, i32 -> vector<8x512xf32>
    %15 = vector.broadcast %0 : vector<1x512xf32> to vector<8x512xf32>
    %16 = arith.mulf %14, %15 : vector<8x512xf32>
    %17 = vector.extract_strided_slice %11 {offsets = [8, 0], sizes = [8, 512], strides = [1, 1]} : vector<72x512xf32> to vector<8x512xf32>
    %c16_i32 = arith.constant 16 : i32
    %18 = tpu.dynamic_rotate %17 by %c16_i32 dim 1 : vector<8x512xf32>, i32 -> vector<8x512xf32>
    %19 = vector.broadcast %1 : vector<1x512xf32> to vector<8x512xf32>
    %20 = arith.mulf %18, %19 : vector<8x512xf32>
    %21 = arith.addf %16, %20 : vector<8x512xf32>
    %22 = vector.extract_strided_slice %11 {offsets = [16, 0], sizes = [8, 512], strides = [1, 1]} : vector<72x512xf32> to vector<8x512xf32>
    %c15_i32 = arith.constant 15 : i32
    %23 = tpu.dynamic_rotate %22 by %c15_i32 dim 1 : vector<8x512xf32>, i32 -> vector<8x512xf32>
    %24 = vector.broadcast %2 : vector<1x512xf32> to vector<8x512xf32>
    %25 = arith.mulf %23, %24 : vector<8x512xf32>
    %26 = arith.addf %21, %25 : vector<8x512xf32>
    %27 = vector.extract_strided_slice %11 {offsets = [24, 0], sizes = [8, 512], strides = [1, 1]} : vector<72x512xf32> to vector<8x512xf32>
    %c1_i32 = arith.constant 1 : i32
    %28 = tpu.dynamic_rotate %27 by %c1_i32 dim 1 : vector<8x512xf32>, i32 -> vector<8x512xf32>
    %29 = vector.broadcast %3 : vector<1x512xf32> to vector<8x512xf32>
    %30 = arith.mulf %28, %29 : vector<8x512xf32>
    %31 = arith.addf %26, %30 : vector<8x512xf32>
    %32 = vector.extract_strided_slice %11 {offsets = [32, 0], sizes = [8, 512], strides = [1, 1]} : vector<72x512xf32> to vector<8x512xf32>
    %33 = vector.broadcast %4 : vector<1x512xf32> to vector<8x512xf32>
    %34 = arith.mulf %32, %33 : vector<8x512xf32>
    %35 = arith.addf %31, %34 : vector<8x512xf32>
    %36 = vector.extract_strided_slice %11 {offsets = [40, 0], sizes = [8, 512], strides = [1, 1]} : vector<72x512xf32> to vector<8x512xf32>
    %c511_i32 = arith.constant 511 : i32
    %37 = tpu.dynamic_rotate %36 by %c511_i32 dim 1 : vector<8x512xf32>, i32 -> vector<8x512xf32>
    %38 = vector.broadcast %5 : vector<1x512xf32> to vector<8x512xf32>
    %39 = arith.mulf %37, %38 : vector<8x512xf32>
    %40 = arith.addf %35, %39 : vector<8x512xf32>
    %41 = vector.extract_strided_slice %11 {offsets = [48, 0], sizes = [8, 512], strides = [1, 1]} : vector<72x512xf32> to vector<8x512xf32>
    %c497_i32 = arith.constant 497 : i32
    %42 = tpu.dynamic_rotate %41 by %c497_i32 dim 1 : vector<8x512xf32>, i32 -> vector<8x512xf32>
    %43 = vector.broadcast %6 : vector<1x512xf32> to vector<8x512xf32>
    %44 = arith.mulf %42, %43 : vector<8x512xf32>
    %45 = arith.addf %40, %44 : vector<8x512xf32>
    %46 = vector.extract_strided_slice %11 {offsets = [56, 0], sizes = [8, 512], strides = [1, 1]} : vector<72x512xf32> to vector<8x512xf32>
    %c496_i32 = arith.constant 496 : i32
    %47 = tpu.dynamic_rotate %46 by %c496_i32 dim 1 : vector<8x512xf32>, i32 -> vector<8x512xf32>
    %48 = vector.broadcast %7 : vector<1x512xf32> to vector<8x512xf32>
    %49 = arith.mulf %47, %48 : vector<8x512xf32>
    %50 = arith.addf %45, %49 : vector<8x512xf32>
    %51 = vector.extract_strided_slice %11 {offsets = [64, 0], sizes = [8, 512], strides = [1, 1]} : vector<72x512xf32> to vector<8x512xf32>
    %c495_i32 = arith.constant 495 : i32
    %52 = tpu.dynamic_rotate %51 by %c495_i32 dim 1 : vector<8x512xf32>, i32 -> vector<8x512xf32>
    %53 = vector.broadcast %8 : vector<1x512xf32> to vector<8x512xf32>
    %54 = arith.mulf %52, %53 : vector<8x512xf32>
    %55 = arith.addf %50, %54 : vector<8x512xf32>
    %56 = vector.broadcast %12 : vector<8x1xf32> to vector<8x512xf32>
    %57 = arith.addf %55, %56 : vector<8x512xf32>
    %cst_15 = arith.constant 2.000000e-01 : f32
    %58 = vector.broadcast %cst_15 : f32 to vector<8x512xf32>
    %59 = arith.mulf %58, %57 : vector<8x512xf32>
    %60 = arith.maximumf %57, %59 : vector<8x512xf32>
    %c0_16 = arith.constant 0 : index
    %c0_17 = arith.constant 0 : index
    %61 = vector.load %arg4[%c0_16, %c0_17] : memref<72x8xf32, #tpu.memory_space<vmem>>, vector<72x8xf32>
    %cst_18 = arith.constant dense<0.000000e+00> : vector<72x512xf32>
    %62 = tpu.matmul %61, %60, %cst_18 {dimension_numbers = #tpu.dot_dimension_numbers<[1], [0], [0], [1], [0, 0, 1, 1], [], []>} : vector<72x8xf32>, vector<8x512xf32>, vector<72x512xf32> -> vector<72x512xf32>
    %c0_19 = arith.constant 0 : index
    %c1_20 = arith.constant 1 : index
    %63 = vector.load %arg5[%c0_19, %c1_20] : memref<8x2xf32, #tpu.memory_space<vmem>>, vector<8x1xf32>
    %64 = vector.extract_strided_slice %62 {offsets = [0, 0], sizes = [8, 512], strides = [1, 1]} : vector<72x512xf32> to vector<8x512xf32>
    %c17_i32_21 = arith.constant 17 : i32
    %65 = tpu.dynamic_rotate %64 by %c17_i32_21 dim 1 : vector<8x512xf32>, i32 -> vector<8x512xf32>
    %66 = vector.broadcast %0 : vector<1x512xf32> to vector<8x512xf32>
    %67 = arith.mulf %65, %66 : vector<8x512xf32>
    %68 = vector.extract_strided_slice %62 {offsets = [8, 0], sizes = [8, 512], strides = [1, 1]} : vector<72x512xf32> to vector<8x512xf32>
    %c16_i32_22 = arith.constant 16 : i32
    %69 = tpu.dynamic_rotate %68 by %c16_i32_22 dim 1 : vector<8x512xf32>, i32 -> vector<8x512xf32>
    %70 = vector.broadcast %1 : vector<1x512xf32> to vector<8x512xf32>
    %71 = arith.mulf %69, %70 : vector<8x512xf32>
    %72 = arith.addf %67, %71 : vector<8x512xf32>
    %73 = vector.extract_strided_slice %62 {offsets = [16, 0], sizes = [8, 512], strides = [1, 1]} : vector<72x512xf32> to vector<8x512xf32>
    %c15_i32_23 = arith.constant 15 : i32
    %74 = tpu.dynamic_rotate %73 by %c15_i32_23 dim 1 : vector<8x512xf32>, i32 -> vector<8x512xf32>
    %75 = vector.broadcast %2 : vector<1x512xf32> to vector<8x512xf32>
    %76 = arith.mulf %74, %75 : vector<8x512xf32>
    %77 = arith.addf %72, %76 : vector<8x512xf32>
    %78 = vector.extract_strided_slice %62 {offsets = [24, 0], sizes = [8, 512], strides = [1, 1]} : vector<72x512xf32> to vector<8x512xf32>
    %c1_i32_24 = arith.constant 1 : i32
    %79 = tpu.dynamic_rotate %78 by %c1_i32_24 dim 1 : vector<8x512xf32>, i32 -> vector<8x512xf32>
    %80 = vector.broadcast %3 : vector<1x512xf32> to vector<8x512xf32>
    %81 = arith.mulf %79, %80 : vector<8x512xf32>
    %82 = arith.addf %77, %81 : vector<8x512xf32>
    %83 = vector.extract_strided_slice %62 {offsets = [32, 0], sizes = [8, 512], strides = [1, 1]} : vector<72x512xf32> to vector<8x512xf32>
    %84 = vector.broadcast %4 : vector<1x512xf32> to vector<8x512xf32>
    %85 = arith.mulf %83, %84 : vector<8x512xf32>
    %86 = arith.addf %82, %85 : vector<8x512xf32>
    %87 = vector.extract_strided_slice %62 {offsets = [40, 0], sizes = [8, 512], strides = [1, 1]} : vector<72x512xf32> to vector<8x512xf32>
    %c511_i32_25 = arith.constant 511 : i32
    %88 = tpu.dynamic_rotate %87 by %c511_i32_25 dim 1 : vector<8x512xf32>, i32 -> vector<8x512xf32>
    %89 = vector.broadcast %5 : vector<1x512xf32> to vector<8x512xf32>
    %90 = arith.mulf %88, %89 : vector<8x512xf32>
    %91 = arith.addf %86, %90 : vector<8x512xf32>
    %92 = vector.extract_strided_slice %62 {offsets = [48, 0], sizes = [8, 512], strides = [1, 1]} : vector<72x512xf32> to vector<8x512xf32>
    %c497_i32_26 = arith.constant 497 : i32
    %93 = tpu.dynamic_rotate %92 by %c497_i32_26 dim 1 : vector<8x512xf32>, i32 -> vector<8x512xf32>
    %94 = vector.broadcast %6 : vector<1x512xf32> to vector<8x512xf32>
    %95 = arith.mulf %93, %94 : vector<8x512xf32>
    %96 = arith.addf %91, %95 : vector<8x512xf32>
    %97 = vector.extract_strided_slice %62 {offsets = [56, 0], sizes = [8, 512], strides = [1, 1]} : vector<72x512xf32> to vector<8x512xf32>
    %c496_i32_27 = arith.constant 496 : i32
    %98 = tpu.dynamic_rotate %97 by %c496_i32_27 dim 1 : vector<8x512xf32>, i32 -> vector<8x512xf32>
    %99 = vector.broadcast %7 : vector<1x512xf32> to vector<8x512xf32>
    %100 = arith.mulf %98, %99 : vector<8x512xf32>
    %101 = arith.addf %96, %100 : vector<8x512xf32>
    %102 = vector.extract_strided_slice %62 {offsets = [64, 0], sizes = [8, 512], strides = [1, 1]} : vector<72x512xf32> to vector<8x512xf32>
    %c495_i32_28 = arith.constant 495 : i32
    %103 = tpu.dynamic_rotate %102 by %c495_i32_28 dim 1 : vector<8x512xf32>, i32 -> vector<8x512xf32>
    %104 = vector.broadcast %8 : vector<1x512xf32> to vector<8x512xf32>
    %105 = arith.mulf %103, %104 : vector<8x512xf32>
    %106 = arith.addf %101, %105 : vector<8x512xf32>
    %107 = vector.broadcast %63 : vector<8x1xf32> to vector<8x512xf32>
    %108 = arith.addf %106, %107 : vector<8x512xf32>
    %c0_29 = arith.constant 0 : index
    %c0_30 = arith.constant 0 : index
    %109 = vector.load %arg1[%c0_29, %c0_30] : memref<4x512xf32, #tpu.memory_space<vmem>>, vector<4x512xf32>
    %110 = vector.extract_strided_slice %108 {offsets = [0, 0], sizes = [4, 512], strides = [1, 1]} : vector<8x512xf32> to vector<4x512xf32>
    %111 = vector.extract_strided_slice %108 {offsets = [4, 0], sizes = [4, 512], strides = [1, 1]} : vector<8x512xf32> to vector<4x512xf32>
    %112 = arith.mulf %109, %110 : vector<4x512xf32>
    %113 = arith.addf %112, %109 : vector<4x512xf32>
    %114 = arith.addf %113, %111 : vector<4x512xf32>
    %c0_31 = arith.constant 0 : index
    %c0_32 = arith.constant 0 : index
    %115 = vector.load %arg7[%c0_31, %c0_32] : memref<4x512xf32, #tpu.memory_space<vmem>>, vector<4x512xf32>
    tpu.vector_store %arg7[%c0_31, %c0_32], %114 {strides = array<i32>} : memref<4x512xf32, #tpu.memory_space<vmem>>, vector<4x512xf32>,
    return
  }
  func.func @transform_0(%arg0: i32) -> (i32, i32) {
    %c0_i32 = arith.constant 0 : i32
    %c0_i32_0 = arith.constant 0 : i32
    %c0_i32_1 = arith.constant 0 : i32
    return %c0_i32, %c0_i32_0 : i32, i32
  }
  func.func @transform_1(%arg0: i32) -> (i32, i32) {
    %c0_i32 = arith.constant 0 : i32
    %c0_i32_0 = arith.constant 0 : i32
    %c0_i32_1 = arith.constant 0 : i32
    return %c0_i32, %c0_i32_0 : i32, i32
  }
  func.func @transform_2(%arg0: i32) -> (i32, i32) {
    %c0_i32 = arith.constant 0 : i32
    %c0_i32_0 = arith.constant 0 : i32
    %c0_i32_1 = arith.constant 0 : i32
    return %c0_i32, %c0_i32_0 : i32, i32
  }
  func.func @transform_3(%arg0: i32) -> (i32, i32) {
    %c0_i32 = arith.constant 0 : i32
    %c0_i32_0 = arith.constant 0 : i32
    %c0_i32_1 = arith.constant 0 : i32
    return %c0_i32, %c0_i32_0 : i32, i32
  }
  func.func @transform_4(%arg0: i32) -> (i32, i32) {
    %c0_i32 = arith.constant 0 : i32
    %c0_i32_0 = arith.constant 0 : i32
    %c0_i32_1 = arith.constant 0 : i32
    return %c0_i32, %c0_i32_0 : i32, i32
  }
  func.func @transform_5(%arg0: i32) -> (i32, i32) {
    %c0_i32 = arith.constant 0 : i32
    %c0_i32_0 = arith.constant 0 : i32
    %c0_i32_1 = arith.constant 0 : i32
    return %c0_i32, %c0_i32_0 : i32, i32
  }
  func.func @transform_6(%arg0: i32) -> (i32, i32) {
    %c0_i32 = arith.constant 0 : i32
    %c0_i32_0 = arith.constant 0 : i32
    %c0_i32_1 = arith.constant 0 : i32
    return %c0_i32, %c0_i32_0 : i32, i32
  }
}

</mosaic_0001>

<llo_original>
// kernel: tpu_custom_call.1
$region0: #{tpu_custom_call.1}
  #allocation0 [shape = 'u32[]', space=smem, size = 0x4, offset = 0x4, fixed_abs, tag = 'smem constant byte address 0x4 - core index']
  #allocation1 [shape = 'u32[144,128]{1,0:T(1,128)}', space=vmem, size = 0x12000, scoped, tag = 'internal scratch']
  %s0 = inlined_call_operand.vmem [shape: f32[4,512], index: 0, kind: input, shape index: {}]
  %s1 = inlined_call_operand.vmem [shape: f32[4,512], index: 1, kind: input, shape index: {}]
  %s2 = inlined_call_operand.vmem [shape: f32[72,4], index: 2, kind: input, shape index: {}]
  %s3 = inlined_call_operand.vmem [shape: f32[72,8], index: 3, kind: input, shape index: {}]
  %s4 = inlined_call_operand.vmem [shape: f32[8,2], index: 4, kind: input, shape index: {}]
  %s5 = inlined_call_operand.vmem [shape: f32[9,512], index: 5, kind: input, shape index: {}]
  %s6 = inlined_call_operand.hbm [shape: f32[4,512], index: 6, kind: output, shape index: {}]
  %s7 = sld [smem:[#allocation0]]
  $region34: #{tpu_custom_call.1} parent=0
    _
  %s9 = ssub.s32 1, %s7
  %s10 = scalar_select 0, %s9, %s7
  $region1: #{tpu_custom_call.1} parent=0
    #allocation2 [shape = 'u8[8192]{0}', space=vmem, size = 0x2000, scoped, tag = 'output window, operand 0, single buffered']
    #allocation3 [shape = 's32[1]{0}', space=sflag, size = 0x4, scoped, tag = 'scoped memory for tpu_custom_call.1']
    %11 = vsyncpa [#allocation3], 0
    // Predicated region
    $region2: #{tpu_custom_call.1} parent=1 // pred_check
      _
    $region3: #{tpu_custom_call.1} parent=1 // pred_check_branch
      %13 = sbr.rel (0) target = $region5
    $region4: #{tpu_custom_call.1} parent=1 // pred_region
      _
    $region5: #{tpu_custom_call.1} parent=1 // pred_fallthru
      _
    // Predicated region
    $region6: #{tpu_custom_call.1} parent=1 // pred_check
      _
    $region7: #{tpu_custom_call.1} parent=1 // pred_check_branch
      %15 = sbr.rel (0) target = $region9
    $region8: #{tpu_custom_call.1} parent=1 // pred_region
      _
    $region9: #{tpu_custom_call.1} parent=1 // pred_fallthru
      _
    // Predicated region
    $region10: #{tpu_custom_call.1} parent=1 // pred_check
      _
    $region11: #{tpu_custom_call.1} parent=1 // pred_check_branch
      %17 = sbr.rel (0) target = $region13
    $region12: #{tpu_custom_call.1} parent=1 // pred_region
      _
    $region13: #{tpu_custom_call.1} parent=1 // pred_fallthru
      _
    // Predicated region
    $region14: #{tpu_custom_call.1} parent=1 // pred_check
      _
    $region15: #{tpu_custom_call.1} parent=1 // pred_check_branch
      %19 = sbr.rel (0) target = $region17
    $region16: #{tpu_custom_call.1} parent=1 // pred_region
      _
    $region17: #{tpu_custom_call.1} parent=1 // pred_fallthru
      _
    // Predicated region
    $region18: #{tpu_custom_call.1} parent=1 // pred_check
      _
    $region19: #{tpu_custom_call.1} parent=1 // pred_check_branch
      %21 = sbr.rel (0) target = $region21
    $region20: #{tpu_custom_call.1} parent=1 // pred_region
      _
    $region21: #{tpu_custom_call.1} parent=1 // pred_fallthru
      _
    // Predicated region
    $region22: #{tpu_custom_call.1} parent=1 // pred_check
      _
    $region23: #{tpu_custom_call.1} parent=1 // pred_check_branch
      %23 = sbr.rel (0) target = $region25
    $region24: #{tpu_custom_call.1} parent=1 // pred_region
      _
    $region25: #{tpu_custom_call.1} parent=1 // pred_fallthru
      _
    %v24 = vld [vmem:[%s5] ss:$8 sm:$0xf]
    %s25 = scalar_lea.vmem %s5, 1
    %v26 = vld [vmem:[%s25] ss:$8 sm:$0xf]
    %s27 = scalar_lea.vmem %s5, 2
    %v28 = vld [vmem:[%s27] ss:$8 sm:$0xf]
    %s29 = scalar_lea.vmem %s5, 3
    %v30 = vld [vmem:[%s29] ss:$8 sm:$0xf]
    %s31 = scalar_lea.vmem %s5, 4
    %v32 = vld [vmem:[%s31] ss:$8 sm:$0xf]
    %s33 = scalar_lea.vmem %s5, 5
    %v34 = vld [vmem:[%s33] ss:$8 sm:$0xf]
    %s35 = scalar_lea.vmem %s5, 6
    %v36 = vld [vmem:[%s35] ss:$8 sm:$0xf]
    %s37 = scalar_lea.vmem %s5, 7
    %v38 = vld [vmem:[%s37] ss:$8 sm:$0xf]
    %s39 = scalar_lea.vmem %s5, 32
    %v40 = vld [vmem:[%s39] ss:$8 sm:$0xf]
    %v41 = vld [vmem:[%s1] sm:$0xff]
    %v42 = vld [vmem:[%s1 + $0x8] sm:$0xff]
    %v43 = vld [vmem:[%s2] sm:$0xff]
    %v44 = vld [vmem:[%s2 + $0x8] sm:$0xff]
    %v45 = vld [vmem:[%s2 + $0x10] sm:$0xff]
    %v46 = vld [vmem:[%s2 + $0x18] sm:$0xff]
    %v47 = vld [vmem:[%s2 + $0x20] sm:$0xff]
    %v48 = vld [vmem:[%s2 + $0x28] sm:$0xff]
    %v49 = vld [vmem:[%s2 + $0x30] sm:$0xff]
    %v50 = vld [vmem:[%s2 + $0x38] sm:$0xff]
    %v51 = vld [vmem:[%s2 + $0x40] sm:$0xff]
    %v54 = vcombine.high %v41, %v41
    %v55 = vcombine.high %v42, %v42
    %vm56 = vcmask 31744
    %v58 = vsel %vm56, %v43, 0
    %v61 = vsel %vm56, %v44, 0
    %v64 = vsel %vm56, %v45, 0
    %v67 = vsel %vm56, %v46, 0
    %v70 = vsel %vm56, %v47, 0
    %v73 = vsel %vm56, %v48, 0
    %v76 = vsel %vm56, %v49, 0
    %v79 = vsel %vm56, %v50, 0
    %v82 = vsel %vm56, %v51, 0
    %vm84 = vcmask 1043456
    %v85 = vsel %vm84, %v41, 0
    %v87 = vsel %vm84, %v54, 0
    %v89 = vsel %vm84, %v42, 0
    %v91 = vsel %vm84, %v55, 0
    %93 = vmatprep.subr.mxu0 0.0
    %94 = vmatpush1.msra.mxu0 0.0
    %95 = vmatprep.subr.mxu0 0.0
    %96 = vmatpush1.msra.mxu0 0.0
    %97 = vmatprep.subr.mxu0 0.0
    %98 = vmatpush1.msra.mxu0 0.0
    %99 = vmatprep.subr.mxu0 0.0
    %100 = vmatpush1.msra.mxu0 0.0
    %101 = vmatprep.subr.mxu0 0.0
    %102 = vmatpush1.msra.mxu0 0.0
    %103 = vmatprep.subr.mxu0 0.0
    %104 = vmatpush1.msra.mxu0 0.0
    %105 = vmatprep.subr.mxu0 0.0
    %106 = vmatpush1.msra.mxu0 0.0
    %107 = vmatprep.subr.mxu0 0.0
    %108 = vmatpush1.msra.mxu0 0.0
    %109 = vmatprep.subr.mxu0 0.0
    %110 = vmatpush1.msra.mxu0 0.0
    %111 = vmatprep.subr.mxu0 0.0
    %112 = vmatpush1.msra.mxu0 0.0
    %113 = vmatprep.subr.mxu0 0.0
    %114 = vmatpush1.msra.mxu0 0.0
    %115 = vmatprep.subr.mxu0 0.0
    %116 = vmatpush1.msra.mxu0 0.0
    %117 = vmatprep.subr.mxu0 0.0
    %118 = vmatpush1.msra.mxu0 0.0
    %119 = vmatprep.subr.mxu0 0.0
    %120 = vmatpush1.msra.mxu0 0.0
    %121 = vmatprep.subr.mxu0 0.0
    %122 = vmatpush1.msra.mxu0 0.0
    %123 = vmatprep.subr.mxu0 %v87
    %124 = vmatpush1.msra.mxu0 %v85
    %125 = vmatprep.subr.mxu0 0.0
    %126 = vmatpush2.msra.mxu0 0.0
    %127 = vmatprep.subr.mxu0 0.0
    %128 = vmatpush2.msra.mxu0 0.0
    %129 = vmatprep.subr.mxu0 0.0
    %130 = vmatpush2.msra.mxu0 0.0
    %131 = vmatprep.subr.mxu0 0.0
    %132 = vmatpush2.msra.mxu0 0.0
    %133 = vmatprep.subr.mxu0 0.0
    %134 = vmatpush2.msra.mxu0 0.0
    %135 = vmatprep.subr.mxu0 0.0
    %136 = vmatpush2.msra.mxu0 0.0
    %137 = vmatprep.subr.mxu0 0.0
    %138 = vmatpush2.msra.mxu0 0.0
    %139 = vmatprep.subr.mxu0 0.0
    %140 = vmatpush2.msra.mxu0 0.0
    %141 = vmatprep.subr.mxu0 0.0
    %142 = vmatpush2.msra.mxu0 0.0
    %143 = vmatprep.subr.mxu0 0.0
    %144 = vmatpush2.msra.mxu0 0.0
    %145 = vmatprep.subr.mxu0 0.0
    %146 = vmatpush2.msra.mxu0 0.0
    %147 = vmatprep.subr.mxu0 0.0
    %148 = vmatpush2.msra.mxu0 0.0
    %149 = vmatprep.subr.mxu0 0.0
    %150 = vmatpush2.msra.mxu0 0.0
    %151 = vmatprep.subr.mxu0 0.0
    %152 = vmatpush2.msra.mxu0 0.0
    %153 = vmatprep.subr.mxu0 0.0
    %154 = vmatpush2.msra.mxu0 0.0
    %155 = vmatprep.subr.mxu0 0.0
    %156 = vmatpush2.msra.mxu0 0.0
    %157 = vmatprep.mubr.f32.mxu0 0.0
    %158 = vmatmul.mubr.f32.gmra.mxu0 %v58
    %v159 = vpop.f32.mrf.mxu0
    %v160 = vadd.f32 0.0, %v159
    %v161 = vpop.f32.mrf.mxu0
    %v162 = vadd.f32 0.0, %v161
    %163 = vmatprep.mubr.f32.mxu0 0.0
    %164 = vmatmul.mubr.f32.gmra.mxu0 %v61
    %v165 = vpop.f32.mrf.mxu0
    %v166 = vadd.f32 0.0, %v165
    %v167 = vpop.f32.mrf.mxu0
    %v168 = vadd.f32 0.0, %v167
    %169 = vmatprep.mubr.f32.mxu0 0.0
    %170 = vmatmul.mubr.f32.gmra.mxu0 %v64
    %v171 = vpop.f32.mrf.mxu0
    %v172 = vadd.f32 0.0, %v171
    %v173 = vpop.f32.mrf.mxu0
    %v174 = vadd.f32 0.0, %v173
    %175 = vmatprep.mubr.f32.mxu0 0.0
    %176 = vmatmul.mubr.f32.gmra.mxu0 %v67
    %v177 = vpop.f32.mrf.mxu0
    %v178 = vadd.f32 0.0, %v177
    %v179 = vpop.f32.mrf.mxu0
    %v180 = vadd.f32 0.0, %v179
    %181 = vmatprep.mubr.f32.mxu0 0.0
    %182 = vmatmul.mubr.f32.gmra.mxu0 %v70
    %v183 = vpop.f32.mrf.mxu0
    %v184 = vadd.f32 0.0, %v183
    %v185 = vpop.f32.mrf.mxu0
    %v186 = vadd.f32 0.0, %v185
    %187 = vmatprep.mubr.f32.mxu0 0.0
    %188 = vmatmul.mubr.f32.gmra.mxu0 %v73
    %v189 = vpop.f32.mrf.mxu0
    %v190 = vadd.f32 0.0, %v189
    %v191 = vpop.f32.mrf.mxu0
    %v192 = vadd.f32 0.0, %v191
    %193 = vmatprep.mubr.f32.mxu0 0.0
    %194 = vmatmul.mubr.f32.gmra.mxu0 %v76
    %v195 = vpop.f32.mrf.mxu0
    %v196 = vadd.f32 0.0, %v195
    %v197 = vpop.f32.mrf.mxu0
    %v198 = vadd.f32 0.0, %v197
    %199 = vmatprep.mubr.f32.mxu0 0.0
    %200 = vmatmul.mubr.f32.gmra.mxu0 %v79
    %v201 = vpop.f32.mrf.mxu0
    %v202 = vadd.f32 0.0, %v201
    %v203 = vpop.f32.mrf.mxu0
    %v204 = vadd.f32 0.0, %v203
    %205 = vmatprep.mubr.f32.mxu0 0.0
    %206 = vmatmul.mubr.f32.gmra.mxu0 %v82
    %v207 = vpop.f32.mrf.mxu0
    %v208 = vadd.f32 0.0, %v207
    %v209 = vpop.f32.mrf.mxu0
    %v210 = vadd.f32 0.0, %v209
    %211 = vdwg.mxu0
    %212 = vmatprep.subr.mxu0 0.0
    %213 = vmatpush1.msra.mxu0 0.0
    %214 = vmatprep.subr.mxu0 0.0
    %215 = vmatpush1.msra.mxu0 0.0
    %216 = vmatprep.subr.mxu0 0.0
    %217 = vmatpush1.msra.mxu0 0.0
    %218 = vmatprep.subr.mxu0 0.0
    %219 = vmatpush1.msra.mxu0 0.0
    %220 = vmatprep.subr.mxu0 0.0
    %221 = vmatpush1.msra.mxu0 0.0
    %222 = vmatprep.subr.mxu0 0.0
    %223 = vmatpush1.msra.mxu0 0.0
    %224 = vmatprep.subr.mxu0 0.0
    %225 = vmatpush1.msra.mxu0 0.0
    %226 = vmatprep.subr.mxu0 0.0
    %227 = vmatpush1.msra.mxu0 0.0
    %228 = vmatprep.subr.mxu0 0.0
    %229 = vmatpush1.msra.mxu0 0.0
    %230 = vmatprep.subr.mxu0 0.0
    %231 = vmatpush1.msra.mxu0 0.0
    %232 = vmatprep.subr.mxu0 0.0
    %233 = vmatpush1.msra.mxu0 0.0
    %234 = vmatprep.subr.mxu0 0.0
    %235 = vmatpush1.msra.mxu0 0.0
    %236 = vmatprep.subr.mxu0 0.0
    %237 = vmatpush1.msra.mxu0 0.0
    %238 = vmatprep.subr.mxu0 0.0
    %239 = vmatpush1.msra.mxu0 0.0
    %240 = vmatprep.subr.mxu0 0.0
    %241 = vmatpush1.msra.mxu0 0.0
    %242 = vmatprep.subr.mxu0 %v91
    %243 = vmatpush1.msra.mxu0 %v89
    %244 = vmatprep.subr.mxu0 0.0
    %245 = vmatpush2.msra.mxu0 0.0
    %246 = vmatprep.subr.mxu0 0.0
    %247 = vmatpush2.msra.mxu0 0.0
    %248 = vmatprep.subr.mxu0 0.0
    %249 = vmatpush2.msra.mxu0 0.0
    %250 = vmatprep.subr.mxu0 0.0
    %251 = vmatpush2.msra.mxu0 0.0
    %252 = vmatprep.subr.mxu0 0.0
    %253 = vmatpush2.msra.mxu0 0.0
    %254 = vmatprep.subr.mxu0 0.0
    %255 = vmatpush2.msra.mxu0 0.0
    %256 = vmatprep.subr.mxu0 0.0
    %257 = vmatpush2.msra.mxu0 0.0
    %258 = vmatprep.subr.mxu0 0.0
    %259 = vmatpush2.msra.mxu0 0.0
    %260 = vmatprep.subr.mxu0 0.0
    %261 = vmatpush2.msra.mxu0 0.0
    %262 = vmatprep.subr.mxu0 0.0
    %263 = vmatpush2.msra.mxu0 0.0
    %264 = vmatprep.subr.mxu0 0.0
    %265 = vmatpush2.msra.mxu0 0.0
    %266 = vmatprep.subr.mxu0 0.0
    %267 = vmatpush2.msra.mxu0 0.0
    %268 = vmatprep.subr.mxu0 0.0
    %269 = vmatpush2.msra.mxu0 0.0
    %270 = vmatprep.subr.mxu0 0.0
    %271 = vmatpush2.msra.mxu0 0.0
    %272 = vmatprep.subr.mxu0 0.0
    %273 = vmatpush2.msra.mxu0 0.0
    %274 = vmatprep.subr.mxu0 0.0
    %275 = vmatpush2.msra.mxu0 0.0
    %276 = vmatprep.mubr.f32.mxu0 0.0
    %277 = vmatmul.mubr.f32.gmra.mxu0 %v58
    %v278 = vpop.f32.mrf.mxu0
    %v279 = vadd.f32 0.0, %v278
    %v280 = vpop.f32.mrf.mxu0
    %v281 = vadd.f32 0.0, %v280
    %282 = vmatprep.mubr.f32.mxu0 0.0
    %283 = vmatmul.mubr.f32.gmra.mxu0 %v61
    %v284 = vpop.f32.mrf.mxu0
    %v285 = vadd.f32 0.0, %v284
    %v286 = vpop.f32.mrf.mxu0
    %v287 = vadd.f32 0.0, %v286
    %288 = vmatprep.mubr.f32.mxu0 0.0
    %289 = vmatmul.mubr.f32.gmra.mxu0 %v64
    %v290 = vpop.f32.mrf.mxu0
    %v291 = vadd.f32 0.0, %v290
    %v292 = vpop.f32.mrf.mxu0
    %v293 = vadd.f32 0.0, %v292
    %294 = vmatprep.mubr.f32.mxu0 0.0
    %295 = vmatmul.mubr.f32.gmra.mxu0 %v67
    %v296 = vpop.f32.mrf.mxu0
    %v297 = vadd.f32 0.0, %v296
    %v298 = vpop.f32.mrf.mxu0
    %v299 = vadd.f32 0.0, %v298
    %300 = vmatprep.mubr.f32.mxu0 0.0
    %301 = vmatmul.mubr.f32.gmra.mxu0 %v70
    %v302 = vpop.f32.mrf.mxu0
    %v303 = vadd.f32 0.0, %v302
    %v304 = vpop.f32.mrf.mxu0
    %v305 = vadd.f32 0.0, %v304
    %306 = vmatprep.mubr.f32.mxu0 0.0
    %307 = vmatmul.mubr.f32.gmra.mxu0 %v73
    %v308 = vpop.f32.mrf.mxu0
    %v309 = vadd.f32 0.0, %v308
    %v310 = vpop.f32.mrf.mxu0
    %v311 = vadd.f32 0.0, %v310
    %312 = vmatprep.mubr.f32.mxu0 0.0
    %313 = vmatmul.mubr.f32.gmra.mxu0 %v76
    %v314 = vpop.f32.mrf.mxu0
    %v315 = vadd.f32 0.0, %v314
    %v316 = vpop.f32.mrf.mxu0
    %v317 = vadd.f32 0.0, %v316
    %318 = vmatprep.mubr.f32.mxu0 0.0
    %319 = vmatmul.mubr.f32.gmra.mxu0 %v79
    %v320 = vpop.f32.mrf.mxu0
    %v321 = vadd.f32 0.0, %v320
    %v322 = vpop.f32.mrf.mxu0
    %v323 = vadd.f32 0.0, %v322
    %324 = vmatprep.mubr.f32.mxu0 0.0
    %325 = vmatmul.mubr.f32.gmra.mxu0 %v82
    %v326 = vpop.f32.mrf.mxu0
    %v327 = vadd.f32 0.0, %v326
    %v328 = vpop.f32.mrf.mxu0
    %v329 = vadd.f32 0.0, %v328
    %330 = vdwg.mxu0
    %v331 = vld [vmem:[%s4] sm:$0xff]
    %332 = vrot.lane.b32.xlu0 %v160, 17
    %v333 = vpop.permute.xlu0 %332
    %334 = vrot.lane.b32.xlu0 %v162, 17
    %v335 = vpop.permute.xlu0 %334
    %336 = vrot.lane.b32.xlu0 %v279, 17
    %v337 = vpop.permute.xlu0 %336
    %338 = vrot.lane.b32.xlu0 %v281, 17
    %v339 = vpop.permute.xlu0 %338
    %v340 = vlaneseq
    %v341 = vand.u32 %v340, 127
    %vm342 = vcmp.lt.s32.totalorder %v341, 17
    %v343 = vsel %vm342, %v337, %v339
    %v344 = vsel %vm342, %v335, %v337
    %v345 = vsel %vm342, %v333, %v335
    %v346 = vsel %vm342, %v339, %v333
    %v348 = vlaneseq
    %v349 = vshrl.u32 %v348, 7
    %v350 = vsub.s32 0, %v349
    %v351 = vrot.slane %v24, %v350
    %v352 = vlaneseq
    %v353 = vshrl.u32 %v352, 7
    %v354 = vsub.s32 1, %v353
    %v355 = vrot.slane %v24, %v354
    %v356 = vlaneseq
    %v357 = vshrl.u32 %v356, 7
    %v358 = vsub.s32 2, %v357
    %v359 = vrot.slane %v24, %v358
    %v360 = vlaneseq
    %v361 = vshrl.u32 %v360, 7
    %v362 = vsub.s32 3, %v361
    %v363 = vrot.slane %v24, %v362
    %v368 = vmul.f32 %v346, %v351
    %v369 = vmul.f32 %v345, %v355
    %v370 = vmul.f32 %v344, %v359
    %v371 = vmul.f32 %v343, %v363
    %372 = vrot.lane.b32.xlu0 %v166, 16
    %v373 = vpop.permute.xlu0 %372
    %374 = vrot.lane.b32.xlu0 %v168, 16
    %v375 = vpop.permute.xlu0 %374
    %376 = vrot.lane.b32.xlu0 %v285, 16
    %v377 = vpop.permute.xlu0 %376
    %378 = vrot.lane.b32.xlu0 %v287, 16
    %v379 = vpop.permute.xlu0 %378
    %vm380 = vcmp.lt.s32.totalorder %v341, 16
    %v381 = vsel %vm380, %v377, %v379
    %v382 = vsel %vm380, %v375, %v377
    %v383 = vsel %vm380, %v373, %v375
    %v384 = vsel %vm380, %v379, %v373
    %v386 = vlaneseq
    %v387 = vshrl.u32 %v386, 7
    %v388 = vsub.s32 0, %v387
    %v389 = vrot.slane %v26, %v388
    %v390 = vlaneseq
    %v391 = vshrl.u32 %v390, 7
    %v392 = vsub.s32 1, %v391
    %v393 = vrot.slane %v26, %v392
    %v394 = vlaneseq
    %v395 = vshrl.u32 %v394, 7
    %v396 = vsub.s32 2, %v395
    %v397 = vrot.slane %v26, %v396
    %v398 = vlaneseq
    %v399 = vshrl.u32 %v398, 7
    %v400 = vsub.s32 3, %v399
    %v401 = vrot.slane %v26, %v400
    %v406 = vmul.f32 %v384, %v389
    %v407 = vmul.f32 %v383, %v393
    %v408 = vmul.f32 %v382, %v397
    %v409 = vmul.f32 %v381, %v401
    %v410 = vadd.f32 %v368, %v406
    %v411 = vadd.f32 %v369, %v407
    %v412 = vadd.f32 %v370, %v408
    %v413 = vadd.f32 %v371, %v409
    %414 = vrot.lane.b32.xlu0 %v172, 15
    %v415 = vpop.permute.xlu0 %414
    %416 = vrot.lane.b32.xlu0 %v174, 15
    %v417 = vpop.permute.xlu0 %416
    %418 = vrot.lane.b32.xlu0 %v291, 15
    %v419 = vpop.permute.xlu0 %418
    %420 = vrot.lane.b32.xlu0 %v293, 15
    %v421 = vpop.permute.xlu0 %420
    %vm422 = vcmp.lt.s32.totalorder %v341, 15
    %v423 = vsel %vm422, %v419, %v421
    %v424 = vsel %vm422, %v417, %v419
    %v425 = vsel %vm422, %v415, %v417
    %v426 = vsel %vm422, %v421, %v415
    %v428 = vlaneseq
    %v429 = vshrl.u32 %v428, 7
    %v430 = vsub.s32 0, %v429
    %v431 = vrot.slane %v28, %v430
    %v432 = vlaneseq
    %v433 = vshrl.u32 %v432, 7
    %v434 = vsub.s32 1, %v433
    %v435 = vrot.slane %v28, %v434
    %v436 = vlaneseq
    %v437 = vshrl.u32 %v436, 7
    %v438 = vsub.s32 2, %v437
    %v439 = vrot.slane %v28, %v438
    %v440 = vlaneseq
    %v441 = vshrl.u32 %v440, 7
    %v442 = vsub.s32 3, %v441
    %v443 = vrot.slane %v28, %v442
    %v448 = vmul.f32 %v426, %v431
    %v449 = vmul.f32 %v425, %v435
    %v450 = vmul.f32 %v424, %v439
    %v451 = vmul.f32 %v423, %v443
    %v452 = vadd.f32 %v410, %v448
    %v453 = vadd.f32 %v411, %v449
    %v454 = vadd.f32 %v412, %v450
    %v455 = vadd.f32 %v413, %v451
    %456 = vrot.lane.b32.xlu0 %v178, 1
    %v457 = vpop.permute.xlu0 %456
    %458 = vrot.lane.b32.xlu0 %v180, 1
    %v459 = vpop.permute.xlu0 %458
    %460 = vrot.lane.b32.xlu0 %v297, 1
    %v461 = vpop.permute.xlu0 %460
    %462 = vrot.lane.b32.xlu0 %v299, 1
    %v463 = vpop.permute.xlu0 %462
    %vm464 = vcmp.lt.s32.totalorder %v341, 1
    %v465 = vsel %vm464, %v461, %v463
    %v466 = vsel %vm464, %v459, %v461
    %v467 = vsel %vm464, %v457, %v459
    %v468 = vsel %vm464, %v463, %v457
    %v470 = vlaneseq
    %v471 = vshrl.u32 %v470, 7
    %v472 = vsub.s32 0, %v471
    %v473 = vrot.slane %v30, %v472
    %v474 = vlaneseq
    %v475 = vshrl.u32 %v474, 7
    %v476 = vsub.s32 1, %v475
    %v477 = vrot.slane %v30, %v476
    %v478 = vlaneseq
    %v479 = vshrl.u32 %v478, 7
    %v480 = vsub.s32 2, %v479
    %v481 = vrot.slane %v30, %v480
    %v482 = vlaneseq
    %v483 = vshrl.u32 %v482, 7
    %v484 = vsub.s32 3, %v483
    %v485 = vrot.slane %v30, %v484
    %v490 = vmul.f32 %v468, %v473
    %v491 = vmul.f32 %v467, %v477
    %v492 = vmul.f32 %v466, %v481
    %v493 = vmul.f32 %v465, %v485
    %v494 = vadd.f32 %v452, %v490
    %v495 = vadd.f32 %v453, %v491
    %v496 = vadd.f32 %v454, %v492
    %v497 = vadd.f32 %v455, %v493
    %v499 = vlaneseq
    %v500 = vshrl.u32 %v499, 7
    %v501 = vsub.s32 0, %v500
    %v502 = vrot.slane %v32, %v501
    %v503 = vlaneseq
    %v504 = vshrl.u32 %v503, 7
    %v505 = vsub.s32 1, %v504
    %v506 = vrot.slane %v32, %v505
    %v507 = vlaneseq
    %v508 = vshrl.u32 %v507, 7
    %v509 = vsub.s32 2, %v508
    %v510 = vrot.slane %v32, %v509
    %v511 = vlaneseq
    %v512 = vshrl.u32 %v511, 7
    %v513 = vsub.s32 3, %v512
    %v514 = vrot.slane %v32, %v513
    %v519 = vmul.f32 %v184, %v502
    %v520 = vmul.f32 %v186, %v506
    %v521 = vmul.f32 %v303, %v510
    %v522 = vmul.f32 %v305, %v514
    %v523 = vadd.f32 %v494, %v519
    %v524 = vadd.f32 %v495, %v520
    %v525 = vadd.f32 %v496, %v521
    %v526 = vadd.f32 %v497, %v522
    %527 = vrot.lane.b32.xlu0 %v190, 127
    %v528 = vpop.permute.xlu0 %527
    %529 = vrot.lane.b32.xlu0 %v192, 127
    %v530 = vpop.permute.xlu0 %529
    %531 = vrot.lane.b32.xlu0 %v309, 127
    %v532 = vpop.permute.xlu0 %531
    %533 = vrot.lane.b32.xlu0 %v311, 127
    %v534 = vpop.permute.xlu0 %533
    %vm535 = vcmp.lt.s32.totalorder %v341, 127
    %v536 = vsel %vm535, %v532, %v534
    %v537 = vsel %vm535, %v530, %v532
    %v538 = vsel %vm535, %v528, %v530
    %v539 = vsel %vm535, %v534, %v528
    %v541 = vlaneseq
    %v542 = vshrl.u32 %v541, 7
    %v543 = vsub.s32 0, %v542
    %v544 = vrot.slane %v34, %v543
    %v545 = vlaneseq
    %v546 = vshrl.u32 %v545, 7
    %v547 = vsub.s32 1, %v546
    %v548 = vrot.slane %v34, %v547
    %v549 = vlaneseq
    %v550 = vshrl.u32 %v549, 7
    %v551 = vsub.s32 2, %v550
    %v552 = vrot.slane %v34, %v551
    %v553 = vlaneseq
    %v554 = vshrl.u32 %v553, 7
    %v555 = vsub.s32 3, %v554
    %v556 = vrot.slane %v34, %v555
    %v561 = vmul.f32 %v538, %v544
    %v562 = vmul.f32 %v537, %v548
    %v563 = vmul.f32 %v536, %v552
    %v564 = vmul.f32 %v539, %v556
    %v565 = vadd.f32 %v523, %v561
    %v566 = vadd.f32 %v524, %v562
    %v567 = vadd.f32 %v525, %v563
    %v568 = vadd.f32 %v526, %v564
    %569 = vrot.lane.b32.xlu0 %v196, 113
    %v570 = vpop.permute.xlu0 %569
    %571 = vrot.lane.b32.xlu0 %v198, 113
    %v572 = vpop.permute.xlu0 %571
    %573 = vrot.lane.b32.xlu0 %v315, 113
    %v574 = vpop.permute.xlu0 %573
    %575 = vrot.lane.b32.xlu0 %v317, 113
    %v576 = vpop.permute.xlu0 %575
    %vm577 = vcmp.lt.s32.totalorder %v341, 113
    %v578 = vsel %vm577, %v574, %v576
    %v579 = vsel %vm577, %v572, %v574
    %v580 = vsel %vm577, %v570, %v572
    %v581 = vsel %vm577, %v576, %v570
    %v583 = vlaneseq
    %v584 = vshrl.u32 %v583, 7
    %v585 = vsub.s32 0, %v584
    %v586 = vrot.slane %v36, %v585
    %v587 = vlaneseq
    %v588 = vshrl.u32 %v587, 7
    %v589 = vsub.s32 1, %v588
    %v590 = vrot.slane %v36, %v589
    %v591 = vlaneseq
    %v592 = vshrl.u32 %v591, 7
    %v593 = vsub.s32 2, %v592
    %v594 = vrot.slane %v36, %v593
    %v595 = vlaneseq
    %v596 = vshrl.u32 %v595, 7
    %v597 = vsub.s32 3, %v596
    %v598 = vrot.slane %v36, %v597
    %v603 = vmul.f32 %v580, %v586
    %v604 = vmul.f32 %v579, %v590
    %v605 = vmul.f32 %v578, %v594
    %v606 = vmul.f32 %v581, %v598
    %v607 = vadd.f32 %v565, %v603
    %v608 = vadd.f32 %v566, %v604
    %v609 = vadd.f32 %v567, %v605
    %v610 = vadd.f32 %v568, %v606
    %611 = vrot.lane.b32.xlu0 %v202, 112
    %v612 = vpop.permute.xlu0 %611
    %613 = vrot.lane.b32.xlu0 %v204, 112
    %v614 = vpop.permute.xlu0 %613
    %615 = vrot.lane.b32.xlu0 %v321, 112
    %v616 = vpop.permute.xlu0 %615
    %617 = vrot.lane.b32.xlu0 %v323, 112
    %v618 = vpop.permute.xlu0 %617
    %vm619 = vcmp.lt.s32.totalorder %v341, 112
    %v620 = vsel %vm619, %v616, %v618
    %v621 = vsel %vm619, %v614, %v616
    %v622 = vsel %vm619, %v612, %v614
    %v623 = vsel %vm619, %v618, %v612
    %v625 = vlaneseq
    %v626 = vshrl.u32 %v625, 7
    %v627 = vsub.s32 0, %v626
    %v628 = vrot.slane %v38, %v627
    %v629 = vlaneseq
    %v630 = vshrl.u32 %v629, 7
    %v631 = vsub.s32 1, %v630
    %v632 = vrot.slane %v38, %v631
    %v633 = vlaneseq
    %v634 = vshrl.u32 %v633, 7
    %v635 = vsub.s32 2, %v634
    %v636 = vrot.slane %v38, %v635
    %v637 = vlaneseq
    %v638 = vshrl.u32 %v637, 7
    %v639 = vsub.s32 3, %v638
    %v640 = vrot.slane %v38, %v639
    %v645 = vmul.f32 %v622, %v628
    %v646 = vmul.f32 %v621, %v632
    %v647 = vmul.f32 %v620, %v636
    %v648 = vmul.f32 %v623, %v640
    %v649 = vadd.f32 %v607, %v645
    %v650 = vadd.f32 %v608, %v646
    %v651 = vadd.f32 %v609, %v647
    %v652 = vadd.f32 %v610, %v648
    %653 = vrot.lane.b32.xlu0 %v208, 111
    %v654 = vpop.permute.xlu0 %653
    %655 = vrot.lane.b32.xlu0 %v210, 111
    %v656 = vpop.permute.xlu0 %655
    %657 = vrot.lane.b32.xlu0 %v327, 111
    %v658 = vpop.permute.xlu0 %657
    %659 = vrot.lane.b32.xlu0 %v329, 111
    %v660 = vpop.permute.xlu0 %659
    %vm661 = vcmp.lt.s32.totalorder %v341, 111
    %v662 = vsel %vm661, %v658, %v660
    %v663 = vsel %vm661, %v656, %v658
    %v664 = vsel %vm661, %v654, %v656
    %v665 = vsel %vm661, %v660, %v654
    %v667 = vlaneseq
    %v668 = vshrl.u32 %v667, 7
    %v669 = vsub.s32 0, %v668
    %v670 = vrot.slane %v40, %v669
    %v671 = vlaneseq
    %v672 = vshrl.u32 %v671, 7
    %v673 = vsub.s32 1, %v672
    %v674 = vrot.slane %v40, %v673
    %v675 = vlaneseq
    %v676 = vshrl.u32 %v675, 7
    %v677 = vsub.s32 2, %v676
    %v678 = vrot.slane %v40, %v677
    %v679 = vlaneseq
    %v680 = vshrl.u32 %v679, 7
    %v681 = vsub.s32 3, %v680
    %v682 = vrot.slane %v40, %v681
    %v687 = vmul.f32 %v664, %v670
    %v688 = vmul.f32 %v663, %v674
    %v689 = vmul.f32 %v662, %v678
    %v690 = vmul.f32 %v665, %v682
    %v691 = vadd.f32 %v649, %v687
    %v692 = vadd.f32 %v650, %v688
    %v693 = vadd.f32 %v651, %v689
    %v694 = vadd.f32 %v652, %v690
    %696 = vset.pattern.permute.xlu0 0
    %697 = vperm.xlu0 %696, %v331
    %v698 = vpop.permute.xlu0 %697
    %v700 = vadd.f32 %v691, %v698
    %v701 = vadd.f32 %v692, %v698
    %v702 = vadd.f32 %v693, %v698
    %v703 = vadd.f32 %v694, %v698
    %v704 = vmul.f32 %v700, 0.2
    %v705 = vmul.f32 %v701, 0.2
    %v706 = vmul.f32 %v702, 0.2
    %v707 = vmul.f32 %v703, 0.2
    %v708 = vmax.f32 %v700, %v704
    %v709 = vmax.f32 %v701, %v705
    %v710 = vmax.f32 %v702, %v706
    %v711 = vmax.f32 %v703, %v707
    %v712 = vld [vmem:[%s3] sm:$0xff]
    %v713 = vld [vmem:[%s3 + $0x8] sm:$0xff]
    %v714 = vld [vmem:[%s3 + $0x10] sm:$0xff]
    %v715 = vld [vmem:[%s3 + $0x18] sm:$0xff]
    %v716 = vld [vmem:[%s3 + $0x20] sm:$0xff]
    %v717 = vld [vmem:[%s3 + $0x28] sm:$0xff]
    %v718 = vld [vmem:[%s3 + $0x30] sm:$0xff]
    %v719 = vld [vmem:[%s3 + $0x38] sm:$0xff]
    %v720 = vld [vmem:[%s3 + $0x40] sm:$0xff]
    %vm721 = vcmask 64512
    %v723 = vsel %vm721, %v712, 0
    %v726 = vsel %vm721, %v713, 0
    %v729 = vsel %vm721, %v714, 0
    %v732 = vsel %vm721, %v715, 0
    %v735 = vsel %vm721, %v716, 0
    %v738 = vsel %vm721, %v717, 0
    %v741 = vsel %vm721, %v718, 0
    %v744 = vsel %vm721, %v719, 0
    %v747 = vsel %vm721, %v720, 0
    %749 = vmatprep.subr.mxu0 0.0
    %750 = vmatpush1.msra.mxu0 0.0
    %751 = vmatprep.subr.mxu0 0.0
    %752 = vmatpush1.msra.mxu0 0.0
    %753 = vmatprep.subr.mxu0 0.0
    %754 = vmatpush1.msra.mxu0 0.0
    %755 = vmatprep.subr.mxu0 0.0
    %756 = vmatpush1.msra.mxu0 0.0
    %757 = vmatprep.subr.mxu0 0.0
    %758 = vmatpush1.msra.mxu0 0.0
    %759 = vmatprep.subr.mxu0 0.0
    %760 = vmatpush1.msra.mxu0 0.0
    %761 = vmatprep.subr.mxu0 0.0
    %762 = vmatpush1.msra.mxu0 0.0
    %763 = vmatprep.subr.mxu0 0.0
    %764 = vmatpush1.msra.mxu0 0.0
    %765 = vmatprep.subr.mxu0 0.0
    %766 = vmatpush1.msra.mxu0 0.0
    %767 = vmatprep.subr.mxu0 0.0
    %768 = vmatpush1.msra.mxu0 0.0
    %769 = vmatprep.subr.mxu0 0.0
    %770 = vmatpush1.msra.mxu0 0.0
    %771 = vmatprep.subr.mxu0 0.0
    %772 = vmatpush1.msra.mxu0 0.0
    %773 = vmatprep.subr.mxu0 0.0
    %774 = vmatpush1.msra.mxu0 0.0
    %775 = vmatprep.subr.mxu0 0.0
    %776 = vmatpush1.msra.mxu0 0.0
    %777 = vmatprep.subr.mxu0 0.0
    %778 = vmatpush1.msra.mxu0 0.0
    %779 = vmatprep.subr.mxu0 %v709
    %780 = vmatpush1.msra.mxu0 %v708
    %781 = vmatprep.subr.mxu0 0.0
    %782 = vmatpush2.msra.mxu0 0.0
    %783 = vmatprep.subr.mxu0 0.0
    %784 = vmatpush2.msra.mxu0 0.0
    %785 = vmatprep.subr.mxu0 0.0
    %786 = vmatpush2.msra.mxu0 0.0
    %787 = vmatprep.subr.mxu0 0.0
    %788 = vmatpush2.msra.mxu0 0.0
    %789 = vmatprep.subr.mxu0 0.0
    %790 = vmatpush2.msra.mxu0 0.0
    %791 = vmatprep.subr.mxu0 0.0
    %792 = vmatpush2.msra.mxu0 0.0
    %793 = vmatprep.subr.mxu0 0.0
    %794 = vmatpush2.msra.mxu0 0.0
    %795 = vmatprep.subr.mxu0 0.0
    %796 = vmatpush2.msra.mxu0 0.0
    %797 = vmatprep.subr.mxu0 0.0
    %798 = vmatpush2.msra.mxu0 0.0
    %799 = vmatprep.subr.mxu0 0.0
    %800 = vmatpush2.msra.mxu0 0.0
    %801 = vmatprep.subr.mxu0 0.0
    %802 = vmatpush2.msra.mxu0 0.0
    %803 = vmatprep.subr.mxu0 0.0
    %804 = vmatpush2.msra.mxu0 0.0
    %805 = vmatprep.subr.mxu0 0.0
    %806 = vmatpush2.msra.mxu0 0.0
    %807 = vmatprep.subr.mxu0 0.0
    %808 = vmatpush2.msra.mxu0 0.0
    %809 = vmatprep.subr.mxu0 0.0
    %810 = vmatpush2.msra.mxu0 0.0
    %811 = vmatprep.subr.mxu0 0.0
    %812 = vmatpush2.msra.mxu0 0.0
    %813 = vmatprep.mubr.f32.mxu0 0.0
    %814 = vmatmul.mubr.f32.gmra.mxu0 %v723
    %v815 = vpop.f32.mrf.mxu0
    %v816 = vadd.f32 0.0, %v815
    %v817 = vpop.f32.mrf.mxu0
    %v818 = vadd.f32 0.0, %v817
    %819 = vmatprep.mubr.f32.mxu0 0.0
    %820 = vmatmul.mubr.f32.gmra.mxu0 %v726
    %v821 = vpop.f32.mrf.mxu0
    %v822 = vadd.f32 0.0, %v821
    %v823 = vpop.f32.mrf.mxu0
    %v824 = vadd.f32 0.0, %v823
    %825 = vmatprep.mubr.f32.mxu0 0.0
    %826 = vmatmul.mubr.f32.gmra.mxu0 %v729
    %v827 = vpop.f32.mrf.mxu0
    %v828 = vadd.f32 0.0, %v827
    %v829 = vpop.f32.mrf.mxu0
    %v830 = vadd.f32 0.0, %v829
    %831 = vmatprep.mubr.f32.mxu0 0.0
    %832 = vmatmul.mubr.f32.gmra.mxu0 %v732
    %v833 = vpop.f32.mrf.mxu0
    %v834 = vadd.f32 0.0, %v833
    %v835 = vpop.f32.mrf.mxu0
    %v836 = vadd.f32 0.0, %v835
    %837 = vmatprep.mubr.f32.mxu0 0.0
    %838 = vmatmul.mubr.f32.gmra.mxu0 %v735
    %v839 = vpop.f32.mrf.mxu0
    %v840 = vadd.f32 0.0, %v839
    %v841 = vpop.f32.mrf.mxu0
    %v842 = vadd.f32 0.0, %v841
    %843 = vmatprep.mubr.f32.mxu0 0.0
    %844 = vmatmul.mubr.f32.gmra.mxu0 %v738
    %v845 = vpop.f32.mrf.mxu0
    %v846 = vadd.f32 0.0, %v845
    %v847 = vpop.f32.mrf.mxu0
    %v848 = vadd.f32 0.0, %v847
    %849 = vmatprep.mubr.f32.mxu0 0.0
    %850 = vmatmul.mubr.f32.gmra.mxu0 %v741
    %v851 = vpop.f32.mrf.mxu0
    %v852 = vadd.f32 0.0, %v851
    %v853 = vpop.f32.mrf.mxu0
    %v854 = vadd.f32 0.0, %v853
    %855 = vmatprep.mubr.f32.mxu0 0.0
    %856 = vmatmul.mubr.f32.gmra.mxu0 %v744
    %v857 = vpop.f32.mrf.mxu0
    %v858 = vadd.f32 0.0, %v857
    %v859 = vpop.f32.mrf.mxu0
    %v860 = vadd.f32 0.0, %v859
    %861 = vmatprep.mubr.f32.mxu0 0.0
    %862 = vmatmul.mubr.f32.gmra.mxu0 %v747
    %v863 = vpop.f32.mrf.mxu0
    %v864 = vadd.f32 0.0, %v863
    %v865 = vpop.f32.mrf.mxu0
    %v866 = vadd.f32 0.0, %v865
    %867 = vdwg.mxu0
    %868 = vmatprep.subr.mxu0 0.0
    %869 = vmatpush1.msra.mxu0 0.0
    %870 = vmatprep.subr.mxu0 0.0
    %871 = vmatpush1.msra.mxu0 0.0
    %872 = vmatprep.subr.mxu0 0.0
    %873 = vmatpush1.msra.mxu0 0.0
    %874 = vmatprep.subr.mxu0 0.0
    %875 = vmatpush1.msra.mxu0 0.0
    %876 = vmatprep.subr.mxu0 0.0
    %877 = vmatpush1.msra.mxu0 0.0
    %878 = vmatprep.subr.mxu0 0.0
    %879 = vmatpush1.msra.mxu0 0.0
    %880 = vmatprep.subr.mxu0 0.0
    %881 = vmatpush1.msra.mxu0 0.0
    %882 = vmatprep.subr.mxu0 0.0
    %883 = vmatpush1.msra.mxu0 0.0
    %884 = vmatprep.subr.mxu0 0.0
    %885 = vmatpush1.msra.mxu0 0.0
    %886 = vmatprep.subr.mxu0 0.0
    %887 = vmatpush1.msra.mxu0 0.0
    %888 = vmatprep.subr.mxu0 0.0
    %889 = vmatpush1.msra.mxu0 0.0
    %890 = vmatprep.subr.mxu0 0.0
    %891 = vmatpush1.msra.mxu0 0.0
    %892 = vmatprep.subr.mxu0 0.0
    %893 = vmatpush1.msra.mxu0 0.0
    %894 = vmatprep.subr.mxu0 0.0
    %895 = vmatpush1.msra.mxu0 0.0
    %896 = vmatprep.subr.mxu0 0.0
    %897 = vmatpush1.msra.mxu0 0.0
    %898 = vmatprep.subr.mxu0 %v711
    %899 = vmatpush1.msra.mxu0 %v710
    %900 = vmatprep.subr.mxu0 0.0
    %901 = vmatpush2.msra.mxu0 0.0
    %902 = vmatprep.subr.mxu0 0.0
    %903 = vmatpush2.msra.mxu0 0.0
    %904 = vmatprep.subr.mxu0 0.0
    %905 = vmatpush2.msra.mxu0 0.0
    %906 = vmatprep.subr.mxu0 0.0
    %907 = vmatpush2.msra.mxu0 0.0
    %908 = vmatprep.subr.mxu0 0.0
    %909 = vmatpush2.msra.mxu0 0.0
    %910 = vmatprep.subr.mxu0 0.0
    %911 = vmatpush2.msra.mxu0 0.0
    %912 = vmatprep.subr.mxu0 0.0
    %913 = vmatpush2.msra.mxu0 0.0
    %914 = vmatprep.subr.mxu0 0.0
    %915 = vmatpush2.msra.mxu0 0.0
    %916 = vmatprep.subr.mxu0 0.0
    %917 = vmatpush2.msra.mxu0 0.0
    %918 = vmatprep.subr.mxu0 0.0
    %919 = vmatpush2.msra.mxu0 0.0
    %920 = vmatprep.subr.mxu0 0.0
    %921 = vmatpush2.msra.mxu0 0.0
    %922 = vmatprep.subr.mxu0 0.0
    %923 = vmatpush2.msra.mxu0 0.0
    %924 = vmatprep.subr.mxu0 0.0
    %925 = vmatpush2.msra.mxu0 0.0
    %926 = vmatprep.subr.mxu0 0.0
    %927 = vmatpush2.msra.mxu0 0.0
    %928 = vmatprep.subr.mxu0 0.0
    %929 = vmatpush2.msra.mxu0 0.0
    %930 = vmatprep.subr.mxu0 0.0
    %931 = vmatpush2.msra.mxu0 0.0
    %932 = vmatprep.mubr.f32.mxu0 0.0
    %933 = vmatmul.mubr.f32.gmra.mxu0 %v723
    %v934 = vpop.f32.mrf.mxu0
    %v935 = vadd.f32 0.0, %v934
    %v936 = vpop.f32.mrf.mxu0
    %v937 = vadd.f32 0.0, %v936
    %938 = vmatprep.mubr.f32.mxu0 0.0
    %939 = vmatmul.mubr.f32.gmra.mxu0 %v726
    %v940 = vpop.f32.mrf.mxu0
    %v941 = vadd.f32 0.0, %v940
    %v942 = vpop.f32.mrf.mxu0
    %v943 = vadd.f32 0.0, %v942
    %944 = vmatprep.mubr.f32.mxu0 0.0
    %945 = vmatmul.mubr.f32.gmra.mxu0 %v729
    %v946 = vpop.f32.mrf.mxu0
    %v947 = vadd.f32 0.0, %v946
    %v948 = vpop.f32.mrf.mxu0
    %v949 = vadd.f32 0.0, %v948
    %950 = vmatprep.mubr.f32.mxu0 0.0
    %951 = vmatmul.mubr.f32.gmra.mxu0 %v732
    %v952 = vpop.f32.mrf.mxu0
    %v953 = vadd.f32 0.0, %v952
    %v954 = vpop.f32.mrf.mxu0
    %v955 = vadd.f32 0.0, %v954
    %956 = vmatprep.mubr.f32.mxu0 0.0
    %957 = vmatmul.mubr.f32.gmra.mxu0 %v735
    %v958 = vpop.f32.mrf.mxu0
    %v959 = vadd.f32 0.0, %v958
    %v960 = vpop.f32.mrf.mxu0
    %v961 = vadd.f32 0.0, %v960
    %962 = vmatprep.mubr.f32.mxu0 0.0
    %963 = vmatmul.mubr.f32.gmra.mxu0 %v738
    %v964 = vpop.f32.mrf.mxu0
    %v965 = vadd.f32 0.0, %v964
    %v966 = vpop.f32.mrf.mxu0
    %v967 = vadd.f32 0.0, %v966
    %968 = vmatprep.mubr.f32.mxu0 0.0
    %969 = vmatmul.mubr.f32.gmra.mxu0 %v741
    %v970 = vpop.f32.mrf.mxu0
    %v971 = vadd.f32 0.0, %v970
    %v972 = vpop.f32.mrf.mxu0
    %v973 = vadd.f32 0.0, %v972
    %974 = vmatprep.mubr.f32.mxu0 0.0
    %975 = vmatmul.mubr.f32.gmra.mxu0 %v744
    %v976 = vpop.f32.mrf.mxu0
    %v977 = vadd.f32 0.0, %v976
    %v978 = vpop.f32.mrf.mxu0
    %v979 = vadd.f32 0.0, %v978
    %980 = vmatprep.mubr.f32.mxu0 0.0
    %981 = vmatmul.mubr.f32.gmra.mxu0 %v747
    %v982 = vpop.f32.mrf.mxu0
    %v983 = vadd.f32 0.0, %v982
    %v984 = vpop.f32.mrf.mxu0
    %v985 = vadd.f32 0.0, %v984
    %986 = vdwg.mxu0
    %987 = vrot.lane.b32.xlu0 %v816, 17
    %v988 = vpop.permute.xlu0 %987
    %989 = vrot.lane.b32.xlu0 %v818, 17
    %v990 = vpop.permute.xlu0 %989
    %991 = vrot.lane.b32.xlu0 %v935, 17
    %v992 = vpop.permute.xlu0 %991
    %993 = vrot.lane.b32.xlu0 %v937, 17
    %v994 = vpop.permute.xlu0 %993
    %v995 = vsel %vm342, %v992, %v994
    %v996 = vsel %vm342, %v990, %v992
    %v997 = vsel %vm342, %v988, %v990
    %v998 = vsel %vm342, %v994, %v988
    %v999 = vmul.f32 %v998, %v351
    %v1000 = vmul.f32 %v997, %v355
    %v1001 = vmul.f32 %v996, %v359
    %v1002 = vmul.f32 %v995, %v363
    %1003 = vrot.lane.b32.xlu0 %v822, 16
    %v1004 = vpop.permute.xlu0 %1003
    %1005 = vrot.lane.b32.xlu0 %v824, 16
    %v1006 = vpop.permute.xlu0 %1005
    %1007 = vrot.lane.b32.xlu0 %v941, 16
    %v1008 = vpop.permute.xlu0 %1007
    %1009 = vrot.lane.b32.xlu0 %v943, 16
    %v1010 = vpop.permute.xlu0 %1009
    %v1011 = vsel %vm380, %v1008, %v1010
    %v1012 = vsel %vm380, %v1006, %v1008
    %v1013 = vsel %vm380, %v1004, %v1006
    %v1014 = vsel %vm380, %v1010, %v1004
    %v1015 = vmul.f32 %v1014, %v389
    %v1016 = vmul.f32 %v1013, %v393
    %v1017 = vmul.f32 %v1012, %v397
    %v1018 = vmul.f32 %v1011, %v401
    %v1019 = vadd.f32 %v999, %v1015
    %v1020 = vadd.f32 %v1000, %v1016
    %v1021 = vadd.f32 %v1001, %v1017
    %v1022 = vadd.f32 %v1002, %v1018
    %1023 = vrot.lane.b32.xlu0 %v828, 15
    %v1024 = vpop.permute.xlu0 %1023
    %1025 = vrot.lane.b32.xlu0 %v830, 15
    %v1026 = vpop.permute.xlu0 %1025
    %1027 = vrot.lane.b32.xlu0 %v947, 15
    %v1028 = vpop.permute.xlu0 %1027
    %1029 = vrot.lane.b32.xlu0 %v949, 15
    %v1030 = vpop.permute.xlu0 %1029
    %v1031 = vsel %vm422, %v1028, %v1030
    %v1032 = vsel %vm422, %v1026, %v1028
    %v1033 = vsel %vm422, %v1024, %v1026
    %v1034 = vsel %vm422, %v1030, %v1024
    %v1035 = vmul.f32 %v1034, %v431
    %v1036 = vmul.f32 %v1033, %v435
    %v1037 = vmul.f32 %v1032, %v439
    %v1038 = vmul.f32 %v1031, %v443
    %v1039 = vadd.f32 %v1019, %v1035
    %v1040 = vadd.f32 %v1020, %v1036
    %v1041 = vadd.f32 %v1021, %v1037
    %v1042 = vadd.f32 %v1022, %v1038
    %1043 = vrot.lane.b32.xlu0 %v834, 1
    %v1044 = vpop.permute.xlu0 %1043
    %1045 = vrot.lane.b32.xlu0 %v836, 1
    %v1046 = vpop.permute.xlu0 %1045
    %1047 = vrot.lane.b32.xlu0 %v953, 1
    %v1048 = vpop.permute.xlu0 %1047
    %1049 = vrot.lane.b32.xlu0 %v955, 1
    %v1050 = vpop.permute.xlu0 %1049
    %v1051 = vsel %vm464, %v1048, %v1050
    %v1052 = vsel %vm464, %v1046, %v1048
    %v1053 = vsel %vm464, %v1044, %v1046
    %v1054 = vsel %vm464, %v1050, %v1044
    %v1055 = vmul.f32 %v1054, %v473
    %v1056 = vmul.f32 %v1053, %v477
    %v1057 = vmul.f32 %v1052, %v481
    %v1058 = vmul.f32 %v1051, %v485
    %v1059 = vadd.f32 %v1039, %v1055
    %v1060 = vadd.f32 %v1040, %v1056
    %v1061 = vadd.f32 %v1041, %v1057
    %v1062 = vadd.f32 %v1042, %v1058
    %v1063 = vmul.f32 %v840, %v502
    %v1064 = vmul.f32 %v842, %v506
    %v1065 = vmul.f32 %v959, %v510
    %v1066 = vmul.f32 %v961, %v514
    %v1067 = vadd.f32 %v1059, %v1063
    %v1068 = vadd.f32 %v1060, %v1064
    %v1069 = vadd.f32 %v1061, %v1065
    %v1070 = vadd.f32 %v1062, %v1066
    %1071 = vrot.lane.b32.xlu0 %v846, 127
    %v1072 = vpop.permute.xlu0 %1071
    %1073 = vrot.lane.b32.xlu0 %v848, 127
    %v1074 = vpop.permute.xlu0 %1073
    %1075 = vrot.lane.b32.xlu0 %v965, 127
    %v1076 = vpop.permute.xlu0 %1075
    %1077 = vrot.lane.b32.xlu0 %v967, 127
    %v1078 = vpop.permute.xlu0 %1077
    %v1079 = vsel %vm535, %v1076, %v1078
    %v1080 = vsel %vm535, %v1074, %v1076
    %v1081 = vsel %vm535, %v1072, %v1074
    %v1082 = vsel %vm535, %v1078, %v1072
    %v1083 = vmul.f32 %v1081, %v544
    %v1084 = vmul.f32 %v1080, %v548
    %v1085 = vmul.f32 %v1079, %v552
    %v1086 = vmul.f32 %v1082, %v556
    %v1087 = vadd.f32 %v1067, %v1083
    %v1088 = vadd.f32 %v1068, %v1084
    %v1089 = vadd.f32 %v1069, %v1085
    %v1090 = vadd.f32 %v1070, %v1086
    %1091 = vrot.lane.b32.xlu0 %v852, 113
    %v1092 = vpop.permute.xlu0 %1091
    %1093 = vrot.lane.b32.xlu0 %v854, 113
    %v1094 = vpop.permute.xlu0 %1093
    %1095 = vrot.lane.b32.xlu0 %v971, 113
    %v1096 = vpop.permute.xlu0 %1095
    %1097 = vrot.lane.b32.xlu0 %v973, 113
    %v1098 = vpop.permute.xlu0 %1097
    %v1099 = vsel %vm577, %v1096, %v1098
    %v1100 = vsel %vm577, %v1094, %v1096
    %v1101 = vsel %vm577, %v1092, %v1094
    %v1102 = vsel %vm577, %v1098, %v1092
    %v1103 = vmul.f32 %v1101, %v586
    %v1104 = vmul.f32 %v1100, %v590
    %v1105 = vmul.f32 %v1099, %v594
    %v1106 = vmul.f32 %v1102, %v598
    %v1107 = vadd.f32 %v1087, %v1103
    %v1108 = vadd.f32 %v1088, %v1104
    %v1109 = vadd.f32 %v1089, %v1105
    %v1110 = vadd.f32 %v1090, %v1106
    %1111 = vrot.lane.b32.xlu0 %v858, 112
    %v1112 = vpop.permute.xlu0 %1111
    %1113 = vrot.lane.b32.xlu0 %v860, 112
    %v1114 = vpop.permute.xlu0 %1113
    %1115 = vrot.lane.b32.xlu0 %v977, 112
    %v1116 = vpop.permute.xlu0 %1115
    %1117 = vrot.lane.b32.xlu0 %v979, 112
    %v1118 = vpop.permute.xlu0 %1117
    %v1119 = vsel %vm619, %v1116, %v1118
    %v1120 = vsel %vm619, %v1114, %v1116
    %v1121 = vsel %vm619, %v1112, %v1114
    %v1122 = vsel %vm619, %v1118, %v1112
    %v1123 = vmul.f32 %v1121, %v628
    %v1124 = vmul.f32 %v1120, %v632
    %v1125 = vmul.f32 %v1119, %v636
    %v1126 = vmul.f32 %v1122, %v640
    %v1127 = vadd.f32 %v1107, %v1123
    %v1128 = vadd.f32 %v1108, %v1124
    %v1129 = vadd.f32 %v1109, %v1125
    %v1130 = vadd.f32 %v1110, %v1126
    %1131 = vrot.lane.b32.xlu0 %v864, 111
    %v1132 = vpop.permute.xlu0 %1131
    %1133 = vrot.lane.b32.xlu0 %v866, 111
    %v1134 = vpop.permute.xlu0 %1133
    %1135 = vrot.lane.b32.xlu0 %v983, 111
    %v1136 = vpop.permute.xlu0 %1135
    %1137 = vrot.lane.b32.xlu0 %v985, 111
    %v1138 = vpop.permute.xlu0 %1137
    %v1139 = vsel %vm661, %v1136, %v1138
    %v1140 = vsel %vm661, %v1134, %v1136
    %v1141 = vsel %vm661, %v1132, %v1134
    %v1142 = vsel %vm661, %v1138, %v1132
    %v1143 = vmul.f32 %v1141, %v670
    %v1144 = vmul.f32 %v1140, %v674
    %v1145 = vmul.f32 %v1139, %v678
    %v1146 = vmul.f32 %v1142, %v682
    %v1147 = vadd.f32 %v1127, %v1143
    %v1148 = vadd.f32 %v1128, %v1144
    %v1149 = vadd.f32 %v1129, %v1145
    %v1150 = vadd.f32 %v1130, %v1146
    %1151 = vset.pattern.permute.xlu0 1
    %1152 = vperm.xlu0 %1151, %v331
    %v1153 = vpop.permute.xlu0 %1152
    %v1155 = vadd.f32 %v1147, %v1153
    %v1156 = vadd.f32 %v1148, %v1153
    %v1157 = vadd.f32 %v1149, %v1153
    %v1158 = vadd.f32 %v1150, %v1153
    %v1159 = vld [vmem:[%s0] sm:$0xff]
    %v1160 = vld [vmem:[%s0 + $0x8] sm:$0xff]
    %v1165 = vcombine.low %v1155, %v1156
    %v1166 = vcombine.low %v1157, %v1158
    %v1169 = vmul.f32 %v1159, %v1165
    %v1170 = vmul.f32 %v1160, %v1166
    %v1171 = vadd.f32 %v1169, %v1159
    %v1172 = vadd.f32 %v1170, %v1160
    %v1173 = vcombine.high %v1155, %v1156
    %v1174 = vcombine.high %v1157, %v1158
    %v1177 = vadd.f32 %v1171, %v1173
    %v1178 = vadd.f32 %v1172, %v1174
    %1179 = vst [vmem:[#allocation2] sm:$0xff] %v1177
    %1180 = vst [vmem:[#allocation2 + $0x8] sm:$0xff] %v1178
    // Predicated region
    $region26: #{tpu_custom_call.1} parent=1 // pred_check
      _
    $region27: #{tpu_custom_call.1} parent=1 // pred_check_branch
      %1182 = sbr.rel (0) target = $region29
    $region28: #{tpu_custom_call.1} parent=1 // pred_region
      %s1184 = ssub.s32 256, 256
      %1185 = vsyncadd [#allocation3], %s1184
      %s1187 = sshll.u32 [#allocation2], 4
      %s1188 = int_to_ptr.vmem [resolvable:$true] %s1187
      %1190 = dma.vmem_to_hbm [thread:$0]  %s1188, 256, %s6, [#allocation3]
    $region29: #{tpu_custom_call.1} parent=1 // pred_fallthru
      _
    // Predicated region
    $region30: #{tpu_custom_call.1} parent=1 // pred_check
      _
    $region31: #{tpu_custom_call.1} parent=1 // pred_check_branch
      %1192 = sbr.rel (0) target = $region33
    $region32: #{tpu_custom_call.1} parent=1 // pred_region
      %1193 = dma.done [#allocation3], 256
    $region33: #{tpu_custom_call.1} parent=1 // pred_fallthru
      _
    %1194 = vsyncpa [#allocation3], 1

</llo_original>
